<compile_context>
chip_gen: v6e
topology: v6e:2x2x1
jax: 0.10.0
libtpu: 0.0.40
codegen_flags: <defaults>
</compile_context>

<pallas_src>
import jax
import jax.numpy as jnp
from jax.experimental import pallas as pl
from jax.experimental.pallas import tpu as pltpu

GROUPS = 8
EPS = 1e-5


def convblock_kernel(p_ref, w_ref, b_ref, gamma_ref, beta_ref, a_ref, o_ref):
    # p_ref:     (9*Cin, NB*H*W) bf16  im2col patches (transposed)
    # w_ref:     (Cout, 9*Cin)   bf16  conv weight
    # b_ref:     (Cout, 1) f32 bias;  gamma_ref/beta_ref: (Cout, 1) f32
    # a_ref:     (Cout, Cout) f32 group-averaging matrix (1/(HW*Cg) in-group)
    # o_ref:     (NB, Cout, H*W)  output = NCHW flattened (lane-dense stores)
    NB, Cout, HW = o_ref.shape

    # --- 3x3 conv: ONE MXU matmul (bf16 operands, f32 accumulation) + bias ---
    acc = jnp.dot(w_ref[...], p_ref[...],
                  preferred_element_type=jnp.float32)          # (Cout, NB*HW)
    acc = acc + b_ref[...]

    # --- GroupNorm(8) + SiLU, per sample (NB is a small static count) ---
    for nb in range(NB):
        y = acc[:, nb * HW:(nb + 1) * HW]          # lane-aligned static slice
        mean_c = jnp.dot(a_ref[...],
                         jnp.sum(y, axis=1, keepdims=True),
                         preferred_element_type=jnp.float32)   # (Cout, 1)
        d = y - mean_c
        var_c = jnp.dot(a_ref[...],
                        jnp.sum(d * d, axis=1, keepdims=True),
                        preferred_element_type=jnp.float32)    # (Cout, 1)
        yn = d * jax.lax.rsqrt(var_c + EPS)
        yn = yn * gamma_ref[...] + beta_ref[...]
        o_ref[nb] = (yn * jax.nn.sigmoid(yn)).astype(o_ref.dtype)   # SiLU


def _samples_per_block(n, hw):
    # Prefer >= 2 grid steps (v7x: 2 TensorCores), pack multiple samples per
    # step for larger batches, and keep the patch block's lane dim 128-aligned
    # unless it already spans the whole batch.
    best = 1
    for nb in range(1, n + 1):
        if n % nb:
            continue
        if nb != n and (nb * hw) % 128 != 0:
            continue
        if nb * hw > 8 * 1024:
            break
        if (n // nb) >= 2 or n == 1:
            best = nb
    return best


def conv_block(x_nchw, weight, bias, gamma, beta, mxu_dtype=jnp.bfloat16):
    """PyTorch-equivalent ConvBlock forward. x_nchw: (N, Cin, H, W) -> (N, Cout, H, W)."""
    N, Cin, H, W = x_nchw.shape
    Cout = weight.shape[0]
    assert Cout % GROUPS == 0
    HW = H * W
    K = 9 * Cin
    Cg = Cout // GROUPS

    # im2col (transposed): rows = (tap, cin), cols = (n, h, w). One fused XLA
    # pad+gather pass; subsumes the old explicit NCHW->NHWC transpose + pad.
    # TODO(synk): keep NHWC end-to-end at the model level to drop even this
    # input-conditioning pass.
    xpad = jnp.pad(x_nchw, ((0, 0), (0, 0), (1, 1), (1, 1)))
    taps = [xpad[:, :, dy:dy + H, dx:dx + W]
            for dy in range(3) for dx in range(3)]
    patches_t = (jnp.stack(taps, axis=0)             # (9, N, Cin, H, W)
                 .transpose(0, 2, 1, 3, 4)           # (9, Cin, N, H, W)
                 .reshape(K, N * HW)
                 .astype(mxu_dtype))

    # (Cout, Cin, 3, 3) -> (Cout, 3, 3, Cin) -> (Cout, 9*Cin); bf16 for the MXU.
    w_t = weight.transpose(0, 2, 3, 1).reshape(Cout, K).astype(mxu_dtype)
    b_col = bias.reshape(Cout, 1).astype(jnp.float32)
    g_col = gamma.reshape(Cout, 1).astype(jnp.float32)
    be_col = beta.reshape(Cout, 1).astype(jnp.float32)

    # Precomputed group-averaging matrix: A[c, c'] = 1/(HW*Cg) if same group.
    gid = jnp.arange(Cout) // Cg
    A = (gid[:, None] == gid[None, :]).astype(jnp.float32) / float(HW * Cg)

    NB = _samples_per_block(N, HW)
    grid = (N // NB,)

    out_flat = pl.pallas_call(
        convblock_kernel,
        out_shape=jax.ShapeDtypeStruct((N, Cout, HW), x_nchw.dtype),
        grid_spec=pltpu.PrefetchScalarGridSpec(
            num_scalar_prefetch=0,
            grid=grid,
            in_specs=[
                pl.BlockSpec((K, NB * HW), lambda i: (0, i)),
                pl.BlockSpec((Cout, K), lambda i: (0, 0)),
                pl.BlockSpec((Cout, 1), lambda i: (0, 0)),
                pl.BlockSpec((Cout, 1), lambda i: (0, 0)),
                pl.BlockSpec((Cout, 1), lambda i: (0, 0)),
                pl.BlockSpec((Cout, Cout), lambda i: (0, 0)),
            ],
            out_specs=pl.BlockSpec((NB, Cout, HW), lambda i: (i, 0, 0)),
        ),
        compiler_params=pltpu.CompilerParams(
            dimension_semantics=("parallel",)),
        # TODO(synk): for large H/W/C, tile spatially (rows + 2-row halo) and
        # set vmem_limit_bytes so blocks stay within v7x's 64 MiB VMEM.
    )(patches_t, w_t, b_col, g_col, be_col, A)

    return out_flat.reshape(N, Cout, H, W)   # already NCHW; no transpose


def conv_block_ref(x_nchw, weight, bias, gamma, beta, matmul_dtype=jnp.float32):
    """Pure-JAX reference (mirrors PyTorch semantics; matmul_dtype controls
    the precision of the conv operands, accumulation is always f32)."""
    dn = jax.lax.conv_dimension_numbers(
        x_nchw.shape, weight.shape, ('NCHW', 'OIHW', 'NCHW'))
    y = jax.lax.conv_general_dilated(
        x_nchw.astype(matmul_dtype), weight.astype(matmul_dtype),
        (1, 1), 'SAME', dimension_numbers=dn,
        preferred_element_type=jnp.float32)
    y = y + bias[None, :, None, None]
    N, C, H, W = y.shape
    yg = y.reshape(N, GROUPS, C // GROUPS, H, W)
    mean = yg.mean(axis=(2, 3, 4), keepdims=True)
    var = ((yg - mean) ** 2).mean(axis=(2, 3, 4), keepdims=True)
    yn = ((yg - mean) * jax.lax.rsqrt(var + EPS)).reshape(N, C, H, W)
    yn = yn * gamma[None, :, None, None] + beta[None, :, None, None]
    return (yn * jax.nn.sigmoid(yn)).astype(x_nchw.dtype)


if __name__ == "__main__":
    # batch=2, in_channels=4, out_channels=16 (divisible by 8 groups), 16x16.
    N, Cin, Cout, H, W = 2, 4, 16, 16, 16

    key = jax.random.PRNGKey(0)
    kx, kw, kb, kg, kbe = jax.random.split(key, 5)
    x = jax.random.normal(kx, (N, Cin, H, W), jnp.float32)
    weight = 0.1 * jax.random.normal(kw, (Cout, Cin, 3, 3), jnp.float32)
    bias = 0.1 * jax.random.normal(kb, (Cout,), jnp.float32)
    gamma = 1.0 + 0.1 * jax.random.normal(kg, (Cout,), jnp.float32)
    beta = 0.1 * jax.random.normal(kbe, (Cout,), jnp.float32)

    out = jax.block_until_ready(conv_block(x, weight, bias, gamma, beta))
    assert out.shape == (N, Cout, H, W), out.shape

    # Tight check vs a reference with the same bf16 conv operands / f32 accum.
    ref_bf16 = jax.block_until_ready(
        conv_block_ref(x, weight, bias, gamma, beta, matmul_dtype=jnp.bfloat16))
    assert jnp.allclose(out, ref_bf16, rtol=1e-4, atol=1e-4), (
        float(jnp.max(jnp.abs(out - ref_bf16))))

    # Looser sanity check vs the pure-f32 PyTorch-equivalent reference; the
    # only difference is bf16 quantization of the conv operands.
    ref_f32 = jax.block_until_ready(
        conv_block_ref(x, weight, bias, gamma, beta, matmul_dtype=jnp.float32))
    assert jnp.allclose(out, ref_f32, rtol=1e-1, atol=5e-2), (
        float(jnp.max(jnp.abs(out - ref_f32))))

    print("KERNEL_OK")
</pallas_src>

<mosaic_0001>
module attributes {stable_mosaic.version = 11 : i64} {
  func.func @convblock_kernel(%arg0: i32, %arg1: memref<36x256xbf16, #tpu.memory_space<vmem>>, %arg2: memref<16x36xbf16, #tpu.memory_space<vmem>>, %arg3: memref<16x1xf32, #tpu.memory_space<vmem>>, %arg4: memref<16x1xf32, #tpu.memory_space<vmem>>, %arg5: memref<16x1xf32, #tpu.memory_space<vmem>>, %arg6: memref<16x16xf32, #tpu.memory_space<vmem>>, %arg7: memref<1x16x256xf32, #tpu.memory_space<vmem>>) attributes {dimension_semantics = [#tpu.dimension_semantics<parallel>], iteration_bounds = array<i64: 2>, scalar_prefetch = 0 : i64, scratch_operands = 0 : i64, tpu.core_type = #tpu.core_type<tc>, window_params = [{transform_indices = @transform_0, window_bounds = array<i64: 36, 256>}, {pipeline_mode = #tpu.pipeline_mode<synchronous>, transform_indices = @transform_1, window_bounds = array<i64: 16, 36>}, {pipeline_mode = #tpu.pipeline_mode<synchronous>, transform_indices = @transform_2, window_bounds = array<i64: 16, 1>}, {pipeline_mode = #tpu.pipeline_mode<synchronous>, transform_indices = @transform_3, window_bounds = array<i64: 16, 1>}, {pipeline_mode = #tpu.pipeline_mode<synchronous>, transform_indices = @transform_4, window_bounds = array<i64: 16, 1>}, {pipeline_mode = #tpu.pipeline_mode<synchronous>, transform_indices = @transform_5, window_bounds = array<i64: 16, 16>}, {transform_indices = @transform_6, window_bounds = array<i64: 1, 16, 256>}]} {
    %c0 = arith.constant 0 : index
    %c0_0 = arith.constant 0 : index
    %0 = vector.load %arg2[%c0, %c0_0] : memref<16x36xbf16, #tpu.memory_space<vmem>>, vector<16x36xbf16>
    %c0_1 = arith.constant 0 : index
    %c0_2 = arith.constant 0 : index
    %1 = vector.load %arg1[%c0_1, %c0_2] : memref<36x256xbf16, #tpu.memory_space<vmem>>, vector<36x256xbf16>
    %cst = arith.constant dense<0.000000e+00> : vector<16x256xf32>
    %2 = tpu.matmul %0, %1, %cst {dimension_numbers = #tpu.dot_dimension_numbers<[1], [0], [0], [1], [0, 0, 1, 1], [], []>} : vector<16x36xbf16>, vector<36x256xbf16>, vector<16x256xf32> -> vector<16x256xf32>
    %c0_3 = arith.constant 0 : index
    %c0_4 = arith.constant 0 : index
    %3 = vector.load %arg3[%c0_3, %c0_4] : memref<16x1xf32, #tpu.memory_space<vmem>>, vector<16x1xf32>
    %4 = vector.broadcast %3 : vector<16x1xf32> to vector<16x256xf32>
    %5 = arith.addf %2, %4 : vector<16x256xf32>
    %c0_5 = arith.constant 0 : index
    %c0_6 = arith.constant 0 : index
    %6 = vector.load %arg6[%c0_5, %c0_6] : memref<16x16xf32, #tpu.memory_space<vmem>>, vector<16x16xf32>
    %cst_7 = arith.constant dense<0.000000e+00> : vector<16xf32>
    %7 = vector.multi_reduction <add>, %5, %cst_7 [1] : vector<16x256xf32> to vector<16xf32>
    %8 = vector.shape_cast %7 : vector<16xf32> to vector<16x1xf32>
    %cst_8 = arith.constant dense<0.000000e+00> : vector<16x1xf32>
    %9 = tpu.matmul %6, %8, %cst_8 {dimension_numbers = #tpu.dot_dimension_numbers<[1], [0], [0], [1], [0, 0, 1, 1], [], []>} : vector<16x16xf32>, vector<16x1xf32>, vector<16x1xf32> -> vector<16x1xf32>
    %10 = vector.broadcast %9 : vector<16x1xf32> to vector<16x256xf32>
    %11 = arith.subf %5, %10 : vector<16x256xf32>
    %c0_9 = arith.constant 0 : index
    %c0_10 = arith.constant 0 : index
    %12 = vector.load %arg6[%c0_9, %c0_10] : memref<16x16xf32, #tpu.memory_space<vmem>>, vector<16x16xf32>
    %13 = arith.mulf %11, %11 : vector<16x256xf32>
    %cst_11 = arith.constant dense<0.000000e+00> : vector<16xf32>
    %14 = vector.multi_reduction <add>, %13, %cst_11 [1] : vector<16x256xf32> to vector<16xf32>
    %15 = vector.shape_cast %14 : vector<16xf32> to vector<16x1xf32>
    %cst_12 = arith.constant dense<0.000000e+00> : vector<16x1xf32>
    %16 = tpu.matmul %12, %15, %cst_12 {dimension_numbers = #tpu.dot_dimension_numbers<[1], [0], [0], [1], [0, 0, 1, 1], [], []>} : vector<16x16xf32>, vector<16x1xf32>, vector<16x1xf32> -> vector<16x1xf32>
    %cst_13 = arith.constant 9.99999974E-6 : f32
    %17 = vector.broadcast %cst_13 : f32 to vector<16x1xf32>
    %18 = arith.addf %16, %17 : vector<16x1xf32>
    %19 = math.rsqrt %18 : vector<16x1xf32>
    %20 = vector.broadcast %19 : vector<16x1xf32> to vector<16x256xf32>
    %21 = arith.mulf %11, %20 : vector<16x256xf32>
    %c0_14 = arith.constant 0 : index
    %c0_15 = arith.constant 0 : index
    %22 = vector.load %arg4[%c0_14, %c0_15] : memref<16x1xf32, #tpu.memory_space<vmem>>, vector<16x1xf32>
    %23 = vector.broadcast %22 : vector<16x1xf32> to vector<16x256xf32>
    %24 = arith.mulf %21, %23 : vector<16x256xf32>
    %c0_16 = arith.constant 0 : index
    %c0_17 = arith.constant 0 : index
    %25 = vector.load %arg5[%c0_16, %c0_17] : memref<16x1xf32, #tpu.memory_space<vmem>>, vector<16x1xf32>
    %26 = vector.broadcast %25 : vector<16x1xf32> to vector<16x256xf32>
    %27 = arith.addf %24, %26 : vector<16x256xf32>
    %28 = arith.negf %27 : vector<16x256xf32>
    %29 = math.exp %28 : vector<16x256xf32>
    %cst_18 = arith.constant 1.000000e+00 : f32
    %30 = vector.broadcast %cst_18 : f32 to vector<16x256xf32>
    %31 = arith.addf %30, %29 : vector<16x256xf32>
    %32 = arith.divf %30, %31 : vector<16x256xf32>
    %33 = arith.mulf %27, %32 : vector<16x256xf32>
    %c0_19 = arith.constant 0 : index
    %c0_20 = arith.constant 0 : index
    %c0_21 = arith.constant 0 : index
    %34 = vector.load %arg7[%c0_19, %c0_20, %c0_21] : memref<1x16x256xf32, #tpu.memory_space<vmem>>, vector<1x16x256xf32>
    %35 = vector.shape_cast %34 : vector<1x16x256xf32> to vector<16x256xf32>
    %36 = vector.shape_cast %33 : vector<16x256xf32> to vector<1x16x256xf32>
    tpu.vector_store %arg7[%c0_19, %c0_20, %c0_21], %36 {strides = array<i32>} : memref<1x16x256xf32, #tpu.memory_space<vmem>>, vector<1x16x256xf32>,
    return
  }
  func.func @transform_0(%arg0: i32) -> (i32, i32) {
    %c0_i32 = arith.constant 0 : i32
    %c0_i32_0 = arith.constant 0 : i32
    return %c0_i32, %arg0 : i32, i32
  }
  func.func @transform_1(%arg0: i32) -> (i32, i32) {
    %c0_i32 = arith.constant 0 : i32
    %c0_i32_0 = arith.constant 0 : i32
    %c0_i32_1 = arith.constant 0 : i32
    return %c0_i32, %c0_i32_0 : i32, i32
  }
  func.func @transform_2(%arg0: i32) -> (i32, i32) {
    %c0_i32 = arith.constant 0 : i32
    %c0_i32_0 = arith.constant 0 : i32
    %c0_i32_1 = arith.constant 0 : i32
    return %c0_i32, %c0_i32_0 : i32, i32
  }
  func.func @transform_3(%arg0: i32) -> (i32, i32) {
    %c0_i32 = arith.constant 0 : i32
    %c0_i32_0 = arith.constant 0 : i32
    %c0_i32_1 = arith.constant 0 : i32
    return %c0_i32, %c0_i32_0 : i32, i32
  }
  func.func @transform_4(%arg0: i32) -> (i32, i32) {
    %c0_i32 = arith.constant 0 : i32
    %c0_i32_0 = arith.constant 0 : i32
    %c0_i32_1 = arith.constant 0 : i32
    return %c0_i32, %c0_i32_0 : i32, i32
  }
  func.func @transform_5(%arg0: i32) -> (i32, i32) {
    %c0_i32 = arith.constant 0 : i32
    %c0_i32_0 = arith.constant 0 : i32
    %c0_i32_1 = arith.constant 0 : i32
    return %c0_i32, %c0_i32_0 : i32, i32
  }
  func.func @transform_6(%arg0: i32) -> (i32, i32, i32) {
    %c0_i32 = arith.constant 0 : i32
    %c0_i32_0 = arith.constant 0 : i32
    %c0_i32_1 = arith.constant 0 : i32
    return %arg0, %c0_i32, %c0_i32_0 : i32, i32, i32
  }
}

</mosaic_0001>

<llo_original>
// kernel: tpu_custom_call.1
$region0: #{tpu_custom_call.1}
  #allocation0 [shape = 'u32[]', space=smem, size = 0x4, offset = 0x4, fixed_abs, tag = 'smem constant byte address 0x4 - core index']
  #allocation1 [shape = 'u32[144,128]{1,0:T(1,128)}', space=vmem, size = 0x12000, scoped, tag = 'internal scratch']
  %s0 = inlined_call_operand.hbm [shape: bf16[36,512], index: 0, kind: input, shape index: {}]
  %s1 = inlined_call_operand.vmem [shape: bf16[16,36], index: 1, kind: input, shape index: {}]
  %s2 = inlined_call_operand.vmem [shape: f32[16,1], index: 2, kind: input, shape index: {}]
  %s3 = inlined_call_operand.vmem [shape: f32[16,1], index: 3, kind: input, shape index: {}]
  %s4 = inlined_call_operand.vmem [shape: f32[16,1], index: 4, kind: input, shape index: {}]
  %s5 = inlined_call_operand.vmem [shape: f32[16,16], index: 5, kind: input, shape index: {}]
  %s6 = inlined_call_operand.hbm [shape: f32[2,16,256], index: 6, kind: output, shape index: {}]
  %s7 = sld [smem:[#allocation0]]
  $region61: #{tpu_custom_call.1} parent=0
    _
  %s9 = ssub.s32 1, %s7
  %s10 = scalar_select 0, %s9, %s7
  $region1: #{tpu_custom_call.1} parent=0
    #allocation2 [shape = 'u8[40960]{0}', space=vmem, size = 0xa000, scoped, tag = 'input window, operand 0']
    #allocation3 [shape = 's32[2]{0}', space=sflag, size = 0x8, scoped, tag = 'scoped memory for tpu_custom_call.1']
    #allocation4 [shape = 's32[2]{0}', space=sflag, size = 0x8, scoped, tag = 'scoped memory for tpu_custom_call.1']
    #allocation5 [shape = 'u8[32768]{0}', space=vmem, size = 0x8000, scoped, tag = 'output window, operand 0']
    %11 = vsyncpa [#allocation3], 0
    %s12 = scalar_lea.sflag [#allocation3], 1
    %13 = vsyncpa %s12, 0
    %14 = vsyncpa [#allocation4], 0
    %s15 = scalar_lea.sflag [#allocation4], 1
    %16 = vsyncpa %s15, 0
    loop: start=0, step=1, limit=4
    $region2: #{tpu_custom_call.1} parent=1 // loop_pre_header
      _
    $region3: #{tpu_custom_call.1} parent=1 // loop_header
      %s18 = sphi 0, %s22
      %p19 = scmp.ge.s32.totalorder %s18, 4
      %s28 = sphi 0, %s30
      %s31 = sphi 0, %s28
      %s32 = sphi 0, %s31
      %s48 = sphi 0, %s32
      %s52 = sphi 0, %s52
      %s54 = sphi 0, %s52
      %s55 = sphi 0, %s54
      %s69 = sphi 0, %s55
      %s73 = sphi 0, %s73
      %s75 = sphi 0, %s73
      %s76 = sphi 0, %s75
      %s90 = sphi 0, %s76
      %s94 = sphi 0, %s94
      %s96 = sphi 0, %s94
      %s97 = sphi 0, %s96
      %s111 = sphi 0, %s97
      %s115 = sphi 0, %s115
      %s117 = sphi 0, %s115
      %s118 = sphi 0, %s117
      %s132 = sphi 0, %s118
      %s136 = sphi 0, %s136
      %s138 = sphi 0, %s136
      %s139 = sphi 0, %s138
      %s153 = sphi 0, %s139
      %s159 = sphi 0, %s161
      %s162 = sphi 0, %s159
      %s163 = sphi 0, %s162
      %s179 = sphi 0, %s163
    $region4: #{tpu_custom_call.1} parent=1 // loop_header_branch
      %21 = sbr.rel (%p19) target = $region8
    $region5: #{tpu_custom_call.1} parent=1 // loop_body
      %s23 = ssub.s32 %s18, 1
      %s24 = ssub.s32 %s18, 2
      %s25 = sadd.s32 %s18, 1
      %s26 = ssub.s32 %s18, %s25
      %p27 = scmp.eq.s32.totalorder %s26, 0
      %s29 = sadd.s32 %s28, 1
      %s30 = scalar_select %p27, %s28, %s29
      %p33 = pneg %p27
      %p34 = scmp.eq.s32.totalorder %s18, 1
      %p35 = por %p33, %p34
      %p36 = scmp.ne.s32.totalorder %s28, %s31
      %p37 = scmp.eq.s32.totalorder %s18, 0
      %p38 = por %p36, %p37
      %p39 = scmp.ne.s32.totalorder %s28, %s31
      %p40 = scmp.eq.s32.totalorder %s23, 1
      %p41 = por %p39, %p40
      %p42 = scmp.ne.s32.totalorder %s31, %s32
      %p43 = scmp.eq.s32.totalorder %s23, 0
      %p44 = por %p42, %p43
      %p45 = scmp.ne.s32.totalorder %s31, %s32
      %p46 = scmp.eq.s32.totalorder %s24, 1
      %p47 = por %p45, %p46
      %p49 = scmp.ne.s32.totalorder %s32, %s48
      %p50 = scmp.eq.s32.totalorder %s24, 0
      %p51 = por %p49, %p50
      %s53 = sadd.s32 %s52, 1
      %p56 = scmp.eq.s32.totalorder %s18, 1
      %p57 = scmp.ne.s32.totalorder %s52, %s54
      %p58 = scmp.eq.s32.totalorder %s18, 0
      %p59 = por %p57, %p58
      %p60 = scmp.ne.s32.totalorder %s52, %s54
      %p61 = scmp.eq.s32.totalorder %s23, 1
      %p62 = por %p60, %p61
      %p63 = scmp.ne.s32.totalorder %s54, %s55
      %p64 = scmp.eq.s32.totalorder %s23, 0
      %p65 = por %p63, %p64
      %p66 = scmp.ne.s32.totalorder %s54, %s55
      %p67 = scmp.eq.s32.totalorder %s24, 1
      %p68 = por %p66, %p67
      %p70 = scmp.ne.s32.totalorder %s55, %s69
      %p71 = scmp.eq.s32.totalorder %s24, 0
      %p72 = por %p70, %p71
      %s74 = sadd.s32 %s73, 1
      %p77 = scmp.eq.s32.totalorder %s18, 1
      %p78 = scmp.ne.s32.totalorder %s73, %s75
      %p79 = scmp.eq.s32.totalorder %s18, 0
      %p80 = por %p78, %p79
      %p81 = scmp.ne.s32.totalorder %s73, %s75
      %p82 = scmp.eq.s32.totalorder %s23, 1
      %p83 = por %p81, %p82
      %p84 = scmp.ne.s32.totalorder %s75, %s76
      %p85 = scmp.eq.s32.totalorder %s23, 0
      %p86 = por %p84, %p85
      %p87 = scmp.ne.s32.totalorder %s75, %s76
      %p88 = scmp.eq.s32.totalorder %s24, 1
      %p89 = por %p87, %p88
      %p91 = scmp.ne.s32.totalorder %s76, %s90
      %p92 = scmp.eq.s32.totalorder %s24, 0
      %p93 = por %p91, %p92
      %s95 = sadd.s32 %s94, 1
      %p98 = scmp.eq.s32.totalorder %s18, 1
      %p99 = scmp.ne.s32.totalorder %s94, %s96
      %p100 = scmp.eq.s32.totalorder %s18, 0
      %p101 = por %p99, %p100
      %p102 = scmp.ne.s32.totalorder %s94, %s96
      %p103 = scmp.eq.s32.totalorder %s23, 1
      %p104 = por %p102, %p103
      %p105 = scmp.ne.s32.totalorder %s96, %s97
      %p106 = scmp.eq.s32.totalorder %s23, 0
      %p107 = por %p105, %p106
      %p108 = scmp.ne.s32.totalorder %s96, %s97
      %p109 = scmp.eq.s32.totalorder %s24, 1
      %p110 = por %p108, %p109
      %p112 = scmp.ne.s32.totalorder %s97, %s111
      %p113 = scmp.eq.s32.totalorder %s24, 0
      %p114 = por %p112, %p113
      %s116 = sadd.s32 %s115, 1
      %p119 = scmp.eq.s32.totalorder %s18, 1
      %p120 = scmp.ne.s32.totalorder %s115, %s117
      %p121 = scmp.eq.s32.totalorder %s18, 0
      %p122 = por %p120, %p121
      %p123 = scmp.ne.s32.totalorder %s115, %s117
      %p124 = scmp.eq.s32.totalorder %s23, 1
      %p125 = por %p123, %p124
      %p126 = scmp.ne.s32.totalorder %s117, %s118
      %p127 = scmp.eq.s32.totalorder %s23, 0
      %p128 = por %p126, %p127
      %p129 = scmp.ne.s32.totalorder %s117, %s118
      %p130 = scmp.eq.s32.totalorder %s24, 1
      %p131 = por %p129, %p130
      %p133 = scmp.ne.s32.totalorder %s118, %s132
      %p134 = scmp.eq.s32.totalorder %s24, 0
      %p135 = por %p133, %p134
      %s137 = sadd.s32 %s136, 1
      %p140 = scmp.eq.s32.totalorder %s18, 1
      %p141 = scmp.ne.s32.totalorder %s136, %s138
      %p142 = scmp.eq.s32.totalorder %s18, 0
      %p143 = por %p141, %p142
      %p144 = scmp.ne.s32.totalorder %s136, %s138
      %p145 = scmp.eq.s32.totalorder %s23, 1
      %p146 = por %p144, %p145
      %p147 = scmp.ne.s32.totalorder %s138, %s139
      %p148 = scmp.eq.s32.totalorder %s23, 0
      %p149 = por %p147, %p148
      %p150 = scmp.ne.s32.totalorder %s138, %s139
      %p151 = scmp.eq.s32.totalorder %s24, 1
      %p152 = por %p150, %p151
      %p154 = scmp.ne.s32.totalorder %s139, %s153
      %p155 = scmp.eq.s32.totalorder %s24, 0
      %p156 = por %p154, %p155
      %s157 = ssub.s32 %s18, %s25
      %p158 = scmp.eq.s32.totalorder %s157, 0
      %s160 = sadd.s32 %s159, 1
      %s161 = scalar_select %p158, %s159, %s160
      %p164 = pneg %p158
      %p165 = scmp.eq.s32.totalorder %s18, 1
      %p166 = por %p164, %p165
      %p167 = scmp.ne.s32.totalorder %s159, %s162
      %p168 = scmp.eq.s32.totalorder %s18, 0
      %p169 = por %p167, %p168
      %p170 = scmp.ne.s32.totalorder %s159, %s162
      %p171 = scmp.eq.s32.totalorder %s23, 1
      %p172 = por %p170, %p171
      %p173 = scmp.ne.s32.totalorder %s162, %s163
      %p174 = scmp.eq.s32.totalorder %s23, 0
      %p175 = por %p173, %p174
      %p176 = scmp.ne.s32.totalorder %s162, %s163
      %p177 = scmp.eq.s32.totalorder %s24, 1
      %p178 = por %p176, %p177
      %p180 = scmp.ne.s32.totalorder %s163, %s179
      %p181 = scmp.eq.s32.totalorder %s24, 0
      %p182 = por %p180, %p181
      %p183 = scmp.le.s32.totalorder 1, %s18
      %p184 = scmp.lt.s32.totalorder %s18, 3
      %p185 = pnand %p183, %p184
      %p186 = pneg %p185
      // Predicated region
      $region9: #{tpu_custom_call.1} parent=5 // pred_check
        _
      $region10: #{tpu_custom_call.1} parent=5 // pred_check_branch
        %188 = sbr.rel (%p185) target = $region12
      $region11: #{tpu_custom_call.1} parent=5 // pred_region
        %s189 = ssub.s32 %s18, 1
        // Predicated region
        $region13: #{tpu_custom_call.1} parent=11 // pred_check
          %p190 = pneg %p65
        $region14: #{tpu_custom_call.1} parent=11 // pred_check_branch
          %192 = sbr.rel (%p190) target = $region16
        $region15: #{tpu_custom_call.1} parent=11 // pred_region
          _
        $region16: #{tpu_custom_call.1} parent=11 // pred_fallthru
          _
        // Predicated region
        $region17: #{tpu_custom_call.1} parent=11 // pred_check
          %p193 = pneg %p86
        $region18: #{tpu_custom_call.1} parent=11 // pred_check_branch
          %195 = sbr.rel (%p193) target = $region20
        $region19: #{tpu_custom_call.1} parent=11 // pred_region
          _
        $region20: #{tpu_custom_call.1} parent=11 // pred_fallthru
          _
        // Predicated region
        $region21: #{tpu_custom_call.1} parent=11 // pred_check
          %p196 = pneg %p107
        $region22: #{tpu_custom_call.1} parent=11 // pred_check_branch
          %198 = sbr.rel (%p196) target = $region24
        $region23: #{tpu_custom_call.1} parent=11 // pred_region
          _
        $region24: #{tpu_custom_call.1} parent=11 // pred_fallthru
          _
        // Predicated region
        $region25: #{tpu_custom_call.1} parent=11 // pred_check
          %p199 = pneg %p128
        $region26: #{tpu_custom_call.1} parent=11 // pred_check_branch
          %201 = sbr.rel (%p199) target = $region28
        $region27: #{tpu_custom_call.1} parent=11 // pred_region
          _
        $region28: #{tpu_custom_call.1} parent=11 // pred_fallthru
          _
        // Predicated region
        $region29: #{tpu_custom_call.1} parent=11 // pred_check
          %p202 = pneg %p149
        $region30: #{tpu_custom_call.1} parent=11 // pred_check_branch
          %204 = sbr.rel (%p202) target = $region32
        $region31: #{tpu_custom_call.1} parent=11 // pred_region
          _
        $region32: #{tpu_custom_call.1} parent=11 // pred_fallthru
          _
      $region12: #{tpu_custom_call.1} parent=5 // pred_fallthru
        _
      %p205 = scmp.lt.s32.totalorder %s18, 2
      // Predicated region
      $region33: #{tpu_custom_call.1} parent=5 // pred_check
        %p206 = pneg %p205
      $region34: #{tpu_custom_call.1} parent=5 // pred_check_branch
        %208 = sbr.rel (%p206) target = $region36
      $region35: #{tpu_custom_call.1} parent=5 // pred_region
        // Predicated region
        $region37: #{tpu_custom_call.1} parent=35 // pred_check
          %p209 = pneg %p38
        $region38: #{tpu_custom_call.1} parent=35 // pred_check_branch
          %211 = sbr.rel (%p209) target = $region40
        $region39: #{tpu_custom_call.1} parent=35 // pred_region
          %s212 = sand.u32 %s28, 1
          %s213 = scalar_lea.sflag [#allocation3], %s212
          %s214 = sand.u32 %s28, 1
          %s215 = smul.addr %s214, 40
          %s216 = scalar_lea.vmem [#allocation2], %s215
          %s217 = smul.u32 2, %s18
          %s219 = ssub.s32 640, 640
          %220 = vsyncadd %s213, %s219
          %s221 = smul.addr %s217, 64
          %s222 = scalar_lea.hbm %s0, %s221
          %s223 = sshll.u32 %s216, 4
          %s224 = int_to_ptr.vmem [resolvable:$true] %s223
          %229 = dma.hbm_to_vmem [thread:$0]  %s222, 640, %s224, %s213, 256, 128, 8
        $region40: #{tpu_custom_call.1} parent=35 // pred_fallthru
          _
      $region36: #{tpu_custom_call.1} parent=5 // pred_fallthru
        _
      %p230 = scmp.le.s32.totalorder 1, %s18
      %p231 = scmp.lt.s32.totalorder %s18, 3
      %p232 = pnand %p230, %p231
      %p233 = pneg %p232
      // Predicated region
      $region41: #{tpu_custom_call.1} parent=5 // pred_check
        _
      $region42: #{tpu_custom_call.1} parent=5 // pred_check_branch
        %235 = sbr.rel (%p232) target = $region44
      $region43: #{tpu_custom_call.1} parent=5 // pred_region
        %s236 = ssub.s32 %s18, 1
        %s237 = sand.u32 %s31, 1
        %s238 = scalar_lea.sflag [#allocation3], %s237
        %s239 = sand.u32 %s31, 1
        %s240 = smul.addr %s239, 40
        %s241 = scalar_lea.vmem [#allocation2], %s240
        // Predicated region
        $region45: #{tpu_custom_call.1} parent=43 // pred_check
          %p242 = pneg %p44
        $region46: #{tpu_custom_call.1} parent=43 // pred_check_branch
          %244 = sbr.rel (%p242) target = $region48
        $region47: #{tpu_custom_call.1} parent=43 // pred_region
          %245 = dma.done %s238, 640
        $region48: #{tpu_custom_call.1} parent=43 // pred_fallthru
          _
        %s246 = sand.u32 %s31, 1
        %s247 = scalar_lea.sflag [#allocation3], %s246
        %s248 = sand.u32 %s31, 1
        %s249 = smul.addr %s248, 40
        %s250 = scalar_lea.vmem [#allocation2], %s249
        %p251 = pneg %p44
        %p252 = pneg %p41
        %p253 = pneg %p65
        %p254 = pneg %p62
        %p255 = pneg %p86
        %p256 = pneg %p83
        %p257 = pneg %p107
        %p258 = pneg %p104
        %p259 = pneg %p128
        %p260 = pneg %p125
        %p261 = pneg %p149
        %p262 = pneg %p146
        %p263 = pneg %p175
        %p264 = pneg %p172
        %s265 = sand.u32 %s162, 1
        %s266 = scalar_lea.sflag [#allocation4], %s265
        %s267 = sand.u32 %s162, 1
        %s268 = smul.addr %s267, 32
        %s269 = scalar_lea.vmem [#allocation5], %s268
        %s270 = smul.u32 2, %s23
        %v272 = vld [vmem:[%s1] sm:$0xf]
        %v273 = vld [vmem:[%s1 + $0x4] sm:$0xf]
        %v274 = vld [vmem:[%s241] sm:$0xff]
        %v275 = vld [vmem:[%s241 + $0x8] sm:$0xff]
        %v276 = vld [vmem:[%s241 + $0x10] sm:$0xff]
        %v277 = vld [vmem:[%s241 + $0x18] sm:$0xff]
        %v278 = vld [vmem:[%s241 + $0x20] sm:$0x33]
        %v279 = vld [vmem:[%s2] sm:$0xff]
        %v280 = vld [vmem:[%s2 + $0x8] sm:$0xff]
        %282 = vset.pattern.permute.xlu0 0
        %283 = vperm.xlu0 %282, %v279
        %v284 = vpop.permute.xlu0 %283
        %287 = vset.pattern.permute.xlu0 0
        %288 = vperm.xlu0 %287, %v280
        %v289 = vpop.permute.xlu0 %288
        %v293 = vunpack.c.l.b16 %v272
        %v294 = vunpack.c.l.b16 %v273
        %v295 = vpack.c.b16 %v294, %v293
        %v301 = vunpack.c.l.b16 %v274
        %v302 = vunpack.c.h.b16 %v274
        %v303 = vunpack.c.l.b16 %v275
        %v304 = vunpack.c.h.b16 %v275
        %v305 = vunpack.c.l.b16 %v276
        %v306 = vunpack.c.h.b16 %v276
        %v307 = vunpack.c.l.b16 %v277
        %v308 = vunpack.c.h.b16 %v277
        %v309 = vunpack.c.l.b16 %v278
        %v310 = vunpack.c.h.b16 %v278
        %v311 = vpack.c.b16 %v303, %v301
        %v312 = vpack.c.b16 %v304, %v302
        %v313 = vpack.c.b16 %v307, %v305
        %v314 = vpack.c.b16 %v308, %v306
        %v315 = vpack.c.b16 %v309, %v309
        %v316 = vpack.c.b16 %v310, %v310
        %vm321 = vcmask 293888
        %v323 = vsel %vm321, %v295, 0
        %vm325 = vcmask 1041408
        %v327 = vsel %vm325, %v315, 0
        %v330 = vsel %vm325, %v316, 0
        %332 = vmatprep.subr.bf16.mxu0 0
        %333 = vmatpush1.bf16.msra.mxu0 0
        %334 = vmatprep.subr.bf16.mxu0 0
        %335 = vmatpush1.bf16.msra.mxu0 0
        %336 = vmatprep.subr.bf16.mxu0 0
        %337 = vmatpush1.bf16.msra.mxu0 0
        %338 = vmatprep.subr.bf16.mxu0 0
        %339 = vmatpush1.bf16.msra.mxu0 0
        %340 = vmatprep.subr.bf16.mxu0 0
        %341 = vmatpush1.bf16.msra.mxu0 0
        %342 = vmatprep.subr.bf16.mxu0 %v330
        %343 = vmatpush1.bf16.msra.mxu0 %v327
        %344 = vmatprep.subr.bf16.mxu0 %v314
        %345 = vmatpush1.bf16.msra.mxu0 %v313
        %346 = vmatprep.subr.bf16.mxu0 %v312
        %347 = vmatpush1.bf16.msra.mxu0 %v311
        %348 = vmatprep.subr.bf16.mxu0 0
        %349 = vmatpush2.bf16.msra.mxu0 0
        %350 = vmatprep.subr.bf16.mxu0 0
        %351 = vmatpush2.bf16.msra.mxu0 0
        %352 = vmatprep.subr.bf16.mxu0 0
        %353 = vmatpush2.bf16.msra.mxu0 0
        %354 = vmatprep.subr.bf16.mxu0 0
        %355 = vmatpush2.bf16.msra.mxu0 0
        %356 = vmatprep.subr.bf16.mxu0 0
        %357 = vmatpush2.bf16.msra.mxu0 0
        %358 = vmatprep.subr.bf16.mxu0 0
        %359 = vmatpush2.bf16.msra.mxu0 0
        %360 = vmatprep.subr.bf16.mxu0 0
        %361 = vmatpush2.bf16.msra.mxu0 0
        %362 = vmatprep.subr.bf16.mxu0 0
        %363 = vmatpush2.bf16.msra.mxu0 0
        %364 = vmatprep.mubr.bf16.mxu0 0
        %365 = vmatmul.mubr.bf16.gmra.mxu0 %v323
        %v366 = vpop.f32.mrf.mxu0
        %v367 = vadd.f32 %v284, %v366
        %v368 = vpop.f32.mrf.mxu0
        %v369 = vadd.f32 %v284, %v368
        %v370 = vpop.f32.mrf.mxu0
        %v371 = vadd.f32 %v289, %v370
        %v372 = vpop.f32.mrf.mxu0
        %v373 = vadd.f32 %v289, %v372
        %374 = vdwg.mxu0
        %v375 = vld [vmem:[%s5] sm:$0xff]
        %v376 = vld [vmem:[%s5 + $0x8] sm:$0xff]
        %v377 = vadd.f32 %v367, %v369
        %378 = vadd.xlane.f32.xlu0 %v377
        %v379 = vpop.xlane.xlu0 %378
        %v380 = vadd.f32 %v371, %v373
        %381 = vadd.xlane.f32.xlu0 %v380
        %v382 = vpop.xlane.xlu0 %381
        %vm383 = vcmask 130048
        %v385 = vsel %vm383, %v375, 0
        %v388 = vsel %vm383, %v376, 0
        %390 = vmatprep.subr.mxu0 0.0
        %391 = vmatpush1.msra.mxu0 0.0
        %392 = vmatprep.subr.mxu0 0.0
        %393 = vmatpush1.msra.mxu0 0.0
        %394 = vmatprep.subr.mxu0 0.0
        %395 = vmatpush1.msra.mxu0 0.0
        %396 = vmatprep.subr.mxu0 0.0
        %397 = vmatpush1.msra.mxu0 0.0
        %398 = vmatprep.subr.mxu0 0.0
        %399 = vmatpush1.msra.mxu0 0.0
        %400 = vmatprep.subr.mxu0 0.0
        %401 = vmatpush1.msra.mxu0 0.0
        %402 = vmatprep.subr.mxu0 0.0
        %403 = vmatpush1.msra.mxu0 0.0
        %404 = vmatprep.subr.mxu0 0.0
        %405 = vmatpush1.msra.mxu0 0.0
        %406 = vmatprep.subr.mxu0 0.0
        %407 = vmatpush1.msra.mxu0 0.0
        %408 = vmatprep.subr.mxu0 0.0
        %409 = vmatpush1.msra.mxu0 0.0
        %410 = vmatprep.subr.mxu0 0.0
        %411 = vmatpush1.msra.mxu0 0.0
        %412 = vmatprep.subr.mxu0 0.0
        %413 = vmatpush1.msra.mxu0 0.0
        %414 = vmatprep.subr.mxu0 0.0
        %415 = vmatpush1.msra.mxu0 0.0
        %416 = vmatprep.subr.mxu0 0.0
        %417 = vmatpush1.msra.mxu0 0.0
        %418 = vmatprep.subr.mxu0 0.0
        %419 = vmatpush1.msra.mxu0 %v382
        %420 = vmatprep.subr.mxu0 0.0
        %421 = vmatpush1.msra.mxu0 %v379
        %422 = vmatprep.subr.mxu0 0.0
        %423 = vmatpush2.msra.mxu0 0.0
        %424 = vmatprep.subr.mxu0 0.0
        %425 = vmatpush2.msra.mxu0 0.0
        %426 = vmatprep.subr.mxu0 0.0
        %427 = vmatpush2.msra.mxu0 0.0
        %428 = vmatprep.subr.mxu0 0.0
        %429 = vmatpush2.msra.mxu0 0.0
        %430 = vmatprep.subr.mxu0 0.0
        %431 = vmatpush2.msra.mxu0 0.0
        %432 = vmatprep.subr.mxu0 0.0
        %433 = vmatpush2.msra.mxu0 0.0
        %434 = vmatprep.subr.mxu0 0.0
        %435 = vmatpush2.msra.mxu0 0.0
        %436 = vmatprep.subr.mxu0 0.0
        %437 = vmatpush2.msra.mxu0 0.0
        %438 = vmatprep.subr.mxu0 0.0
        %439 = vmatpush2.msra.mxu0 0.0
        %440 = vmatprep.subr.mxu0 0.0
        %441 = vmatpush2.msra.mxu0 0.0
        %442 = vmatprep.subr.mxu0 0.0
        %443 = vmatpush2.msra.mxu0 0.0
        %444 = vmatprep.subr.mxu0 0.0
        %445 = vmatpush2.msra.mxu0 0.0
        %446 = vmatprep.subr.mxu0 0.0
        %447 = vmatpush2.msra.mxu0 0.0
        %448 = vmatprep.subr.mxu0 0.0
        %449 = vmatpush2.msra.mxu0 0.0
        %450 = vmatprep.subr.mxu0 0.0
        %451 = vmatpush2.msra.mxu0 0.0
        %452 = vmatprep.subr.mxu0 0.0
        %453 = vmatpush2.msra.mxu0 0.0
        %454 = vmatprep.mubr.f32.mxu0 0.0
        %455 = vmatmul.mubr.f32.gmra.mxu0 %v385
        %v456 = vpop.f32.mrf.mxu0
        %v457 = vadd.f32 0.0, %v456
        %v458 = vpop.f32.mrf.mxu0
        %459 = vmatprep.mubr.f32.mxu0 0.0
        %460 = vmatmul.mubr.f32.gmra.mxu0 %v388
        %v461 = vpop.f32.mrf.mxu0
        %v462 = vadd.f32 0.0, %v461
        %v463 = vpop.f32.mrf.mxu0
        %464 = vdwg.mxu0
        %466 = vset.pattern.permute.xlu0 0
        %467 = vperm.xlu0 %466, %v457
        %v468 = vpop.permute.xlu0 %467
        %471 = vset.pattern.permute.xlu0 0
        %472 = vperm.xlu0 %471, %v462
        %v473 = vpop.permute.xlu0 %472
        %v475 = vsub.f32 %v367, %v468
        %v476 = vsub.f32 %v369, %v468
        %v477 = vsub.f32 %v371, %v473
        %v478 = vsub.f32 %v373, %v473
        %v479 = vmul.f32 %v475, %v475
        %v480 = vmul.f32 %v476, %v476
        %v481 = vmul.f32 %v477, %v477
        %v482 = vmul.f32 %v478, %v478
        %v483 = vadd.f32 %v479, %v480
        %484 = vadd.xlane.f32.xlu0 %v483
        %v485 = vpop.xlane.xlu0 %484
        %v486 = vadd.f32 %v481, %v482
        %487 = vadd.xlane.f32.xlu0 %v486
        %v488 = vpop.xlane.xlu0 %487
        %489 = vmatprep.subr.mxu0 0.0
        %490 = vmatpush1.msra.mxu0 0.0
        %491 = vmatprep.subr.mxu0 0.0
        %492 = vmatpush1.msra.mxu0 0.0
        %493 = vmatprep.subr.mxu0 0.0
        %494 = vmatpush1.msra.mxu0 0.0
        %495 = vmatprep.subr.mxu0 0.0
        %496 = vmatpush1.msra.mxu0 0.0
        %497 = vmatprep.subr.mxu0 0.0
        %498 = vmatpush1.msra.mxu0 0.0
        %499 = vmatprep.subr.mxu0 0.0
        %500 = vmatpush1.msra.mxu0 0.0
        %501 = vmatprep.subr.mxu0 0.0
        %502 = vmatpush1.msra.mxu0 0.0
        %503 = vmatprep.subr.mxu0 0.0
        %504 = vmatpush1.msra.mxu0 0.0
        %505 = vmatprep.subr.mxu0 0.0
        %506 = vmatpush1.msra.mxu0 0.0
        %507 = vmatprep.subr.mxu0 0.0
        %508 = vmatpush1.msra.mxu0 0.0
        %509 = vmatprep.subr.mxu0 0.0
        %510 = vmatpush1.msra.mxu0 0.0
        %511 = vmatprep.subr.mxu0 0.0
        %512 = vmatpush1.msra.mxu0 0.0
        %513 = vmatprep.subr.mxu0 0.0
        %514 = vmatpush1.msra.mxu0 0.0
        %515 = vmatprep.subr.mxu0 0.0
        %516 = vmatpush1.msra.mxu0 0.0
        %517 = vmatprep.subr.mxu0 0.0
        %518 = vmatpush1.msra.mxu0 %v488
        %519 = vmatprep.subr.mxu0 0.0
        %520 = vmatpush1.msra.mxu0 %v485
        %521 = vmatprep.subr.mxu0 0.0
        %522 = vmatpush2.msra.mxu0 0.0
        %523 = vmatprep.subr.mxu0 0.0
        %524 = vmatpush2.msra.mxu0 0.0
        %525 = vmatprep.subr.mxu0 0.0
        %526 = vmatpush2.msra.mxu0 0.0
        %527 = vmatprep.subr.mxu0 0.0
        %528 = vmatpush2.msra.mxu0 0.0
        %529 = vmatprep.subr.mxu0 0.0
        %530 = vmatpush2.msra.mxu0 0.0
        %531 = vmatprep.subr.mxu0 0.0
        %532 = vmatpush2.msra.mxu0 0.0
        %533 = vmatprep.subr.mxu0 0.0
        %534 = vmatpush2.msra.mxu0 0.0
        %535 = vmatprep.subr.mxu0 0.0
        %536 = vmatpush2.msra.mxu0 0.0
        %537 = vmatprep.subr.mxu0 0.0
        %538 = vmatpush2.msra.mxu0 0.0
        %539 = vmatprep.subr.mxu0 0.0
        %540 = vmatpush2.msra.mxu0 0.0
        %541 = vmatprep.subr.mxu0 0.0
        %542 = vmatpush2.msra.mxu0 0.0
        %543 = vmatprep.subr.mxu0 0.0
        %544 = vmatpush2.msra.mxu0 0.0
        %545 = vmatprep.subr.mxu0 0.0
        %546 = vmatpush2.msra.mxu0 0.0
        %547 = vmatprep.subr.mxu0 0.0
        %548 = vmatpush2.msra.mxu0 0.0
        %549 = vmatprep.subr.mxu0 0.0
        %550 = vmatpush2.msra.mxu0 0.0
        %551 = vmatprep.subr.mxu0 0.0
        %552 = vmatpush2.msra.mxu0 0.0
        %553 = vmatprep.mubr.f32.mxu0 0.0
        %554 = vmatmul.mubr.f32.gmra.mxu0 %v385
        %v555 = vpop.f32.mrf.mxu0
        %v556 = vadd.f32 1e-05, %v555
        %v557 = vpop.f32.mrf.mxu0
        %558 = vmatprep.mubr.f32.mxu0 0.0
        %559 = vmatmul.mubr.f32.gmra.mxu0 %v388
        %v560 = vpop.f32.mrf.mxu0
        %v561 = vadd.f32 1e-05, %v560
        %v562 = vpop.f32.mrf.mxu0
        %563 = vdwg.mxu0
        %v564 = vrsqrt.pop %v556
        %v565 = vrsqrt.pop %v561
        %567 = vset.pattern.permute.xlu0 0
        %568 = vperm.xlu0 %567, %v564
        %v569 = vpop.permute.xlu0 %568
        %572 = vset.pattern.permute.xlu0 0
        %573 = vperm.xlu0 %572, %v565
        %v574 = vpop.permute.xlu0 %573
        %v576 = vmul.f32 %v475, %v569
        %v577 = vmul.f32 %v476, %v569
        %v578 = vmul.f32 %v477, %v574
        %v579 = vmul.f32 %v478, %v574
        %v580 = vld [vmem:[%s3] sm:$0xff]
        %v581 = vld [vmem:[%s3 + $0x8] sm:$0xff]
        %583 = vset.pattern.permute.xlu0 0
        %584 = vperm.xlu0 %583, %v580
        %v585 = vpop.permute.xlu0 %584
        %588 = vset.pattern.permute.xlu0 0
        %589 = vperm.xlu0 %588, %v581
        %v590 = vpop.permute.xlu0 %589
        %v592 = vmul.f32 %v576, %v585
        %v593 = vmul.f32 %v577, %v585
        %v594 = vmul.f32 %v578, %v590
        %v595 = vmul.f32 %v579, %v590
        %v596 = vld [vmem:[%s4] sm:$0xff]
        %v597 = vld [vmem:[%s4 + $0x8] sm:$0xff]
        %599 = vset.pattern.permute.xlu0 0
        %600 = vperm.xlu0 %599, %v596
        %v601 = vpop.permute.xlu0 %600
        %604 = vset.pattern.permute.xlu0 0
        %605 = vperm.xlu0 %604, %v597
        %v606 = vpop.permute.xlu0 %605
        %v608 = vadd.f32 %v592, %v601
        %v609 = vadd.f32 %v593, %v601
        %v610 = vadd.f32 %v594, %v606
        %v611 = vadd.f32 %v595, %v606
        %v612 = vxor.u32 %v608, 2147483648
        %v613 = vxor.u32 %v609, 2147483648
        %v614 = vxor.u32 %v610, 2147483648
        %v615 = vxor.u32 %v611, 2147483648
        %v616 = vmul.f32 %v612, 1.442695
        %v617 = vpow.pop %v616
        %v618 = vmul.f32 %v613, 1.442695
        %v619 = vpow.pop %v618
        %v620 = vmul.f32 %v614, 1.442695
        %v621 = vpow.pop %v620
        %v622 = vmul.f32 %v615, 1.442695
        %v623 = vpow.pop %v622
        %v624 = vadd.f32 %v617, 1.0
        %v625 = vadd.f32 %v619, 1.0
        %v626 = vadd.f32 %v621, 1.0
        %v627 = vadd.f32 %v623, 1.0
        %v628 = vrcp.pop %v624
        %v629 = vmul.f32 1.0, %v628
        %v630 = vrcp.pop %v625
        %v631 = vmul.f32 1.0, %v630
        %v632 = vrcp.pop %v626
        %v633 = vmul.f32 1.0, %v632
        %v634 = vrcp.pop %v627
        %v635 = vmul.f32 1.0, %v634
        %v636 = vmul.f32 %v608, %v629
        %v637 = vmul.f32 %v609, %v631
        %v638 = vmul.f32 %v610, %v633
        %v639 = vmul.f32 %v611, %v635
        %640 = vst [vmem:[%s269] sm:$0xff] %v636
        %641 = vst [vmem:[%s269 + $0x8] sm:$0xff] %v637
        %642 = vst [vmem:[%s269 + $0x10] sm:$0xff] %v638
        %643 = vst [vmem:[%s269 + $0x18] sm:$0xff] %v639
        %s644 = sand.u32 %s162, 1
        %s645 = scalar_lea.sflag [#allocation4], %s644
        %s646 = sand.u32 %s162, 1
        %s647 = smul.addr %s646, 32
        %s648 = scalar_lea.vmem [#allocation5], %s647
        // Predicated region
        $region49: #{tpu_custom_call.1} parent=43 // pred_check
          %p649 = pneg %p172
        $region50: #{tpu_custom_call.1} parent=43 // pred_check_branch
          %651 = sbr.rel (%p649) target = $region52
        $region51: #{tpu_custom_call.1} parent=43 // pred_region
          %s653 = ssub.s32 512, 512
          %654 = vsyncadd %s645, %s653
          %s655 = smul.addr %s23, 4
          %s656 = smul.addr %s655, 128
          %s657 = scalar_lea.hbm %s6, %s656
          %s658 = sshll.u32 %s648, 4
          %s659 = int_to_ptr.vmem [resolvable:$true] %s658
          %664 = dma.vmem_to_hbm [thread:$0]  %s659, 512, %s657, %s645, 256, 256, 16
        $region52: #{tpu_custom_call.1} parent=43 // pred_fallthru
          _
      $region44: #{tpu_custom_call.1} parent=5 // pred_fallthru
        _
      %p665 = scmp.le.s32.totalorder 2, %s18
      // Predicated region
      $region53: #{tpu_custom_call.1} parent=5 // pred_check
        %p666 = pneg %p665
      $region54: #{tpu_custom_call.1} parent=5 // pred_check_branch
        %668 = sbr.rel (%p666) target = $region56
      $region55: #{tpu_custom_call.1} parent=5 // pred_region
        %s669 = ssub.s32 %s18, 2
        // Predicated region
        $region57: #{tpu_custom_call.1} parent=55 // pred_check
          %p670 = pneg %p178
        $region58: #{tpu_custom_call.1} parent=55 // pred_check_branch
          %672 = sbr.rel (%p670) target = $region60
        $region59: #{tpu_custom_call.1} parent=55 // pred_region
          %s673 = sand.u32 %s163, 1
          %s674 = scalar_lea.sflag [#allocation4], %s673
          %s675 = sand.u32 %s163, 1
          %s676 = smul.addr %s675, 32
          %s677 = scalar_lea.vmem [#allocation5], %s676
          %678 = dma.done %s674, 512
        $region60: #{tpu_custom_call.1} parent=55 // pred_fallthru
          _
      $region56: #{tpu_custom_call.1} parent=5 // pred_fallthru
        _
    $region6: #{tpu_custom_call.1} parent=1 // loop_footer
      %s22 = sadd.s32 1, %s18
    $region7: #{tpu_custom_call.1} parent=1 // loop_footer_branch
      %17 = sbr.rel target = $region3
    $region8: #{tpu_custom_call.1} parent=1 // loop_exit
      _
    %679 = vsyncpa [#allocation3], 1
    %s680 = scalar_lea.sflag [#allocation3], 1
    %681 = vsyncpa %s680, 1
    %682 = vsyncpa [#allocation4], 1
    %s683 = scalar_lea.sflag [#allocation4], 1
    %684 = vsyncpa %s683, 1

</llo_original>
